<compile_context>
chip_gen: v6e
topology: v6e:2x2x1
jax: 0.10.0
libtpu: 0.0.40
codegen_flags: <defaults>
</compile_context>

<pallas_src>
import jax
import jax.numpy as jnp
from jax.experimental import pallas as pl
from jax.experimental.pallas import tpu as pltpu

EPS = 1e-5


def _round_up(x, m):
    return ((x + m - 1) // m) * m


# ----------------------------------------------------------------------------
# Kernel: one (OUT-tile j, K-tile k) grid step of Linear -> ReLU -> BatchNorm1d
# ----------------------------------------------------------------------------
def block_kernel(x_ref, wt_ref, b_ref, gamma_ref, beta_ref, o_ref):
    k = pl.program_id(1)

    # MXU partial product: bf16 operands streamed from HBM, f32 accumulation
    # directly into the resident output tile (no separate accumulator scratch).
    partial = jnp.dot(x_ref[...], wt_ref[...], preferred_element_type=jnp.float32)

    @pl.when(k == 0)
    def _():
        o_ref[...] = partial            # first K step: write, no zero-init pass

    @pl.when(k > 0)
    def _():
        o_ref[...] += partial           # subsequent K steps: accumulate

    # Epilogue: bias + ReLU + BatchNorm1d (training-mode batch statistics),
    # done in place on the resident o_ref tile.
    @pl.when(k == pl.num_programs(1) - 1)
    def _():
        o_ref[...] = jnp.maximum(o_ref[...] + b_ref[...], 0.0)   # y = ReLU(h+b)
        y = o_ref[...]                                           # (B, TN) f32
        inv_n = 1.0 / y.shape[0]
        s = jnp.sum(y, axis=0, keepdims=True)                    # fused one pass:
        sq = jnp.sum(y * y, axis=0, keepdims=True)               #   sum and sum(y^2)
        mean = s * inv_n
        var = jnp.maximum(sq * inv_n - mean * mean, 0.0)         # biased var, >= 0
        scale = jax.lax.rsqrt(var + EPS) * gamma_ref[...]        # (1, TN)
        o_ref[...] = (y - mean) * scale + beta_ref[...]


# ----------------------------------------------------------------------------
# Init-time parameter preparation (transpose + pad + bf16 cast happen ONCE)
# ----------------------------------------------------------------------------
def choose_tiles(inp, out, *, tn=256, tk=512):
    if inp <= 2048:
        tk = _round_up(inp, 128)        # single K step: no per-k RMW of o_ref
    else:
        tk = min(tk, _round_up(inp, 128))
    tn = min(tn, _round_up(out, 128))
    return tn, tk


def prepare_block_params(w, b, gamma, beta, *, tn=None, tk=None):
    """w: (out, inp) PyTorch Linear layout; returns padded/transposed bf16 weight."""
    out, inp = w.shape
    tn_d, tk_d = choose_tiles(inp, out)
    tn = tn_d if tn is None else tn
    tk = tk_d if tk is None else tk
    inp_p = _round_up(inp, tk)
    out_p = _round_up(out, tn)

    w_t = jnp.pad(jnp.transpose(w), ((0, inp_p - inp), (0, out_p - out)))
    w_t = w_t.astype(jnp.bfloat16)                              # pre-cast once

    def pad_row(v):
        return jnp.pad(v.astype(jnp.float32), (0, out_p - out)).reshape(1, out_p)

    return dict(w_t=w_t, b=pad_row(b), gamma=pad_row(gamma), beta=pad_row(beta),
                inp=inp, out=out, inp_p=inp_p, out_p=out_p, tn=tn, tk=tk)


# ----------------------------------------------------------------------------
# Forward wrapper
# ----------------------------------------------------------------------------
def block_forward(x, params):
    """BatchNorm1d(ReLU(x @ W^T + b)).  x: (B, inp) -> (B, out) float32."""
    B, inp = x.shape
    assert inp == params["inp"], "input feature mismatch"
    inp_p, out_p = params["inp_p"], params["out_p"]
    out, tn, tk = params["out"], params["tn"], params["tk"]

    # Cast activations to bf16 once (halves x DMA traffic and its VMEM tile);
    # pad only the feature axis -- never the batch (would corrupt BN stats).
    x = x.astype(jnp.bfloat16)
    if inp_p != inp:
        x = jnp.pad(x, ((0, 0), (0, inp_p - inp)))

    grid = (out_p // tn, inp_p // tk)   # (OUT tiles: parallel, K tiles: arbitrary)

    # VMEM budget: double-buffered bf16 x / W tiles, f32 param rows, f32 output
    # tile (resident accumulator, pipelined across OUT tiles).
    est = (2 * 2 * (B * tk + tk * tn)   # bf16 input tiles, double-buffered
           + 2 * 4 * 3 * tn             # bias / gamma / beta rows
           + 2 * 4 * B * tn)            # f32 output/accumulator tile
    try:
        phys_vmem = pltpu.get_tpu_info().vmem_capacity_bytes
    except Exception:  # pragma: no cover - interpreter / older runtimes
        phys_vmem = 64 << 20
    vmem_limit = int(min(max(2 * est, 16 << 20), (3 * phys_vmem) // 4))

    out_padded = pl.pallas_call(
        block_kernel,
        out_shape=jax.ShapeDtypeStruct((B, out_p), jnp.float32),
        grid_spec=pltpu.PrefetchScalarGridSpec(
            num_scalar_prefetch=0,
            grid=grid,
            in_specs=[
                pl.BlockSpec((B, tk), lambda j, k: (0, k)),    # x tile (bf16)
                pl.BlockSpec((tk, tn), lambda j, k: (k, j)),   # W^T tile (bf16)
                pl.BlockSpec((1, tn), lambda j, k: (0, j)),    # bias
                pl.BlockSpec((1, tn), lambda j, k: (0, j)),    # gamma
                pl.BlockSpec((1, tn), lambda j, k: (0, j)),    # beta
            ],
            out_specs=pl.BlockSpec((B, tn), lambda j, k: (0, j)),
        ),
        compiler_params=pltpu.CompilerParams(
            dimension_semantics=("parallel", "arbitrary"),
            vmem_limit_bytes=vmem_limit,
        ),
    )(x, params["w_t"], params["b"], params["gamma"], params["beta"])

    return out_padded[:, :out] if out_p != out else out_padded


# ----------------------------------------------------------------------------
# Reference (matches kernel numerics: bf16 MXU operands, f32 accumulation,
# training-mode BatchNorm1d with biased variance)
# ----------------------------------------------------------------------------
def reference(x, w, b, gamma, beta):
    h = jnp.dot(x.astype(jnp.bfloat16), jnp.transpose(w).astype(jnp.bfloat16),
                preferred_element_type=jnp.float32) + b
    h = jnp.maximum(h, 0.0)
    mu = h.mean(0, keepdims=True)
    var = ((h - mu) ** 2).mean(0, keepdims=True)
    return (h - mu) / jnp.sqrt(var + EPS) * gamma + beta


if __name__ == "__main__":
    key = jax.random.PRNGKey(0)

    def make_raw_params(k, inp, out):
        kw, kb = jax.random.split(k)
        bound = 1.0 / (inp ** 0.5)
        w = jax.random.uniform(kw, (out, inp), minval=-bound, maxval=bound,
                               dtype=jnp.float32)          # PyTorch Linear layout
        b = jax.random.uniform(kb, (out,), minval=-bound, maxval=bound,
                               dtype=jnp.float32)
        gamma = jnp.ones((out,), jnp.float32)               # fresh BatchNorm1d
        beta = jnp.zeros((out,), jnp.float32)
        return w, b, gamma, beta

    k1, k2, kx1, kx2 = jax.random.split(key, 4)

    # Case 1: aligned shapes, explicit small tiles -> (OUT, K) grid = (2, 2).
    B1, INP1, OUT1 = 128, 256, 256
    x1 = jax.random.normal(kx1, (B1, INP1), dtype=jnp.float32)
    w1, b1, g1, be1 = make_raw_params(k1, INP1, OUT1)
    p1 = prepare_block_params(w1, b1, g1, be1, tn=128, tk=128)
    y1 = block_forward(x1, p1)
    jax.block_until_ready(y1)
    ref1 = reference(x1, w1, b1, g1, be1)
    assert y1.shape == (B1, OUT1)
    assert jnp.allclose(y1, ref1, atol=2e-3, rtol=2e-3), "case 1 mismatch"

    # Case 2: unaligned feature dims (padding + lane-dense output, single K step).
    B2, INP2, OUT2 = 8, 100, 200
    x2 = jax.random.normal(kx2, (B2, INP2), dtype=jnp.float32)
    w2, b2, g2, be2 = make_raw_params(k2, INP2, OUT2)
    p2 = prepare_block_params(w2, b2, g2, be2)
    y2 = block_forward(x2, p2)
    jax.block_until_ready(y2)
    ref2 = reference(x2, w2, b2, g2, be2)
    assert y2.shape == (B2, OUT2)
    assert jnp.allclose(y2, ref2, atol=2e-3, rtol=2e-3), "case 2 mismatch"

    print("KERNEL_OK")
</pallas_src>

<mosaic_0001>
module attributes {stable_mosaic.version = 11 : i64} {
  func.func @block_kernel(%arg0: i32, %arg1: i32, %arg2: memref<128x128xbf16, #tpu.memory_space<vmem>>, %arg3: memref<128x128xbf16, #tpu.memory_space<vmem>>, %arg4: memref<1x128xf32, #tpu.memory_space<vmem>>, %arg5: memref<1x128xf32, #tpu.memory_space<vmem>>, %arg6: memref<1x128xf32, #tpu.memory_space<vmem>>, %arg7: memref<128x128xf32, #tpu.memory_space<vmem>>) attributes {dimension_semantics = [#tpu.dimension_semantics<parallel>, #tpu.dimension_semantics<arbitrary>], iteration_bounds = array<i64: 2, 2>, scalar_prefetch = 0 : i64, scratch_operands = 0 : i64, tpu.core_type = #tpu.core_type<tc>, window_params = [{transform_indices = @transform_0, window_bounds = array<i64: 128, 128>}, {transform_indices = @transform_1, window_bounds = array<i64: 128, 128>}, {transform_indices = @transform_2, window_bounds = array<i64: 1, 128>}, {transform_indices = @transform_3, window_bounds = array<i64: 1, 128>}, {transform_indices = @transform_4, window_bounds = array<i64: 1, 128>}, {transform_indices = @transform_5, window_bounds = array<i64: 128, 128>}]} {
    %c0 = arith.constant 0 : index
    %c0_0 = arith.constant 0 : index
    %0 = vector.load %arg2[%c0, %c0_0] : memref<128x128xbf16, #tpu.memory_space<vmem>>, vector<128x128xbf16>
    %c0_1 = arith.constant 0 : index
    %c0_2 = arith.constant 0 : index
    %1 = vector.load %arg3[%c0_1, %c0_2] : memref<128x128xbf16, #tpu.memory_space<vmem>>, vector<128x128xbf16>
    %cst = arith.constant dense<0.000000e+00> : vector<128x128xf32>
    %2 = tpu.matmul %0, %1, %cst {dimension_numbers = #tpu.dot_dimension_numbers<[1], [0], [0], [1], [0, 0, 1, 1], [], []>} : vector<128x128xbf16>, vector<128x128xbf16>, vector<128x128xf32> -> vector<128x128xf32>
    %c0_i32 = arith.constant 0 : i32
    %3 = arith.cmpi eq, %arg1, %c0_i32 : i32
    %4 = arith.extui %3 : i1 to i32
    %c0_i32_3 = arith.constant 0 : i32
    %5 = arith.cmpi ne, %4, %c0_i32_3 : i32
    scf.if %5 {
      %c0_7 = arith.constant 0 : index
      %c0_8 = arith.constant 0 : index
      %12 = vector.load %arg7[%c0_7, %c0_8] : memref<128x128xf32, #tpu.memory_space<vmem>>, vector<128x128xf32>
      tpu.vector_store %arg7[%c0_7, %c0_8], %2 {strides = array<i32>} : memref<128x128xf32, #tpu.memory_space<vmem>>, vector<128x128xf32>,
    } else {
    }
    %c0_i32_4 = arith.constant 0 : i32
    %6 = arith.cmpi sgt, %arg1, %c0_i32_4 : i32
    %7 = arith.extui %6 : i1 to i32
    %c0_i32_5 = arith.constant 0 : i32
    %8 = arith.cmpi ne, %7, %c0_i32_5 : i32
    scf.if %8 {
      %c0_7 = arith.constant 0 : index
      %c0_8 = arith.constant 0 : index
      %12 = vector.load %arg7[%c0_7, %c0_8] : memref<128x128xf32, #tpu.memory_space<vmem>>, vector<128x128xf32>
      %13 = arith.addf %12, %2 : vector<128x128xf32>
      %c0_9 = arith.constant 0 : index
      %c0_10 = arith.constant 0 : index
      %14 = vector.load %arg7[%c0_9, %c0_10] : memref<128x128xf32, #tpu.memory_space<vmem>>, vector<128x128xf32>
      tpu.vector_store %arg7[%c0_9, %c0_10], %13 {strides = array<i32>} : memref<128x128xf32, #tpu.memory_space<vmem>>, vector<128x128xf32>,
    } else {
    }
    %c1_i32 = arith.constant 1 : i32
    %9 = arith.cmpi eq, %arg1, %c1_i32 : i32
    %10 = arith.extui %9 : i1 to i32
    %c0_i32_6 = arith.constant 0 : i32
    %11 = arith.cmpi ne, %10, %c0_i32_6 : i32
    scf.if %11 {
      %c0_7 = arith.constant 0 : index
      %c0_8 = arith.constant 0 : index
      %12 = vector.load %arg7[%c0_7, %c0_8] : memref<128x128xf32, #tpu.memory_space<vmem>>, vector<128x128xf32>
      %c0_9 = arith.constant 0 : index
      %c0_10 = arith.constant 0 : index
      %13 = vector.load %arg4[%c0_9, %c0_10] : memref<1x128xf32, #tpu.memory_space<vmem>>, vector<1x128xf32>
      %14 = vector.broadcast %13 : vector<1x128xf32> to vector<128x128xf32>
      %15 = arith.addf %12, %14 : vector<128x128xf32>
      %cst_11 = arith.constant 0.000000e+00 : f32
      %16 = vector.broadcast %cst_11 : f32 to vector<128x128xf32>
      %17 = arith.maximumf %15, %16 : vector<128x128xf32>
      %c0_12 = arith.constant 0 : index
      %c0_13 = arith.constant 0 : index
      %18 = vector.load %arg7[%c0_12, %c0_13] : memref<128x128xf32, #tpu.memory_space<vmem>>, vector<128x128xf32>
      tpu.vector_store %arg7[%c0_12, %c0_13], %17 {strides = array<i32>} : memref<128x128xf32, #tpu.memory_space<vmem>>, vector<128x128xf32>,
      %c0_14 = arith.constant 0 : index
      %c0_15 = arith.constant 0 : index
      %19 = vector.load %arg7[%c0_14, %c0_15] : memref<128x128xf32, #tpu.memory_space<vmem>>, vector<128x128xf32>
      %cst_16 = arith.constant dense<0.000000e+00> : vector<128xf32>
      %20 = vector.multi_reduction <add>, %19, %cst_16 [0] : vector<128x128xf32> to vector<128xf32>
      %21 = vector.shape_cast %20 : vector<128xf32> to vector<1x128xf32>
      %22 = arith.mulf %19, %19 : vector<128x128xf32>
      %cst_17 = arith.constant dense<0.000000e+00> : vector<128xf32>
      %23 = vector.multi_reduction <add>, %22, %cst_17 [0] : vector<128x128xf32> to vector<128xf32>
      %24 = vector.shape_cast %23 : vector<128xf32> to vector<1x128xf32>
      %cst_18 = arith.constant 7.812500e-03 : f32
      %25 = vector.broadcast %cst_18 : f32 to vector<1x128xf32>
      %26 = arith.mulf %21, %25 : vector<1x128xf32>
      %cst_19 = arith.constant 7.812500e-03 : f32
      %27 = vector.broadcast %cst_19 : f32 to vector<1x128xf32>
      %28 = arith.mulf %24, %27 : vector<1x128xf32>
      %29 = arith.mulf %26, %26 : vector<1x128xf32>
      %30 = arith.subf %28, %29 : vector<1x128xf32>
      %cst_20 = arith.constant 0.000000e+00 : f32
      %31 = vector.broadcast %cst_20 : f32 to vector<1x128xf32>
      %32 = arith.maximumf %30, %31 : vector<1x128xf32>
      %cst_21 = arith.constant 9.99999974E-6 : f32
      %33 = vector.broadcast %cst_21 : f32 to vector<1x128xf32>
      %34 = arith.addf %32, %33 : vector<1x128xf32>
      %35 = math.rsqrt %34 : vector<1x128xf32>
      %c0_22 = arith.constant 0 : index
      %c0_23 = arith.constant 0 : index
      %36 = vector.load %arg5[%c0_22, %c0_23] : memref<1x128xf32, #tpu.memory_space<vmem>>, vector<1x128xf32>
      %37 = arith.mulf %35, %36 : vector<1x128xf32>
      %38 = vector.broadcast %26 : vector<1x128xf32> to vector<128x128xf32>
      %39 = arith.subf %19, %38 : vector<128x128xf32>
      %40 = vector.broadcast %37 : vector<1x128xf32> to vector<128x128xf32>
      %41 = arith.mulf %39, %40 : vector<128x128xf32>
      %c0_24 = arith.constant 0 : index
      %c0_25 = arith.constant 0 : index
      %42 = vector.load %arg6[%c0_24, %c0_25] : memref<1x128xf32, #tpu.memory_space<vmem>>, vector<1x128xf32>
      %43 = vector.broadcast %42 : vector<1x128xf32> to vector<128x128xf32>
      %44 = arith.addf %41, %43 : vector<128x128xf32>
      %c0_26 = arith.constant 0 : index
      %c0_27 = arith.constant 0 : index
      %45 = vector.load %arg7[%c0_26, %c0_27] : memref<128x128xf32, #tpu.memory_space<vmem>>, vector<128x128xf32>
      tpu.vector_store %arg7[%c0_26, %c0_27], %44 {strides = array<i32>} : memref<128x128xf32, #tpu.memory_space<vmem>>, vector<128x128xf32>,
    } else {
    }
    return
  }
  func.func @transform_0(%arg0: i32, %arg1: i32) -> (i32, i32) {
    %c0_i32 = arith.constant 0 : i32
    %c0_i32_0 = arith.constant 0 : i32
    return %c0_i32, %arg1 : i32, i32
  }
  func.func @transform_1(%arg0: i32, %arg1: i32) -> (i32, i32) {
    %c0_i32 = arith.constant 0 : i32
    return %arg1, %arg0 : i32, i32
  }
  func.func @transform_2(%arg0: i32, %arg1: i32) -> (i32, i32) {
    %c0_i32 = arith.constant 0 : i32
    %c0_i32_0 = arith.constant 0 : i32
    return %c0_i32, %arg0 : i32, i32
  }
  func.func @transform_3(%arg0: i32, %arg1: i32) -> (i32, i32) {
    %c0_i32 = arith.constant 0 : i32
    %c0_i32_0 = arith.constant 0 : i32
    return %c0_i32, %arg0 : i32, i32
  }
  func.func @transform_4(%arg0: i32, %arg1: i32) -> (i32, i32) {
    %c0_i32 = arith.constant 0 : i32
    %c0_i32_0 = arith.constant 0 : i32
    return %c0_i32, %arg0 : i32, i32
  }
  func.func @transform_5(%arg0: i32, %arg1: i32) -> (i32, i32) {
    %c0_i32 = arith.constant 0 : i32
    %c0_i32_0 = arith.constant 0 : i32
    return %c0_i32, %arg0 : i32, i32
  }
}

</mosaic_0001>

<llo_original>
// kernel: tpu_custom_call.1
$region0: #{tpu_custom_call.1}
  #allocation0 [shape = 'u32[]', space=smem, size = 0x4, offset = 0x4, fixed_abs, tag = 'smem constant byte address 0x4 - core index']
  #allocation1 [shape = 'u32[144,128]{1,0:T(1,128)}', space=vmem, size = 0x12000, scoped, tag = 'internal scratch']
  %s0 = inlined_call_operand.hbm [shape: bf16[128,256], index: 0, kind: input, shape index: {}]
  %s1 = inlined_call_operand.hbm [shape: bf16[256,256], index: 1, kind: input, shape index: {}]
  %s2 = inlined_call_operand.vmem [shape: f32[1,256], index: 2, kind: input, shape index: {}]
  %s3 = inlined_call_operand.vmem [shape: f32[1,256], index: 3, kind: input, shape index: {}]
  %s4 = inlined_call_operand.vmem [shape: f32[1,256], index: 4, kind: input, shape index: {}]
  %s5 = inlined_call_operand.hbm [shape: f32[128,256], index: 5, kind: output, shape index: {}]
  %s6 = sld [smem:[#allocation0]]
  $region73: #{tpu_custom_call.1} parent=0
    _
  %s8 = ssub.s32 1, %s6
  %s9 = scalar_select 0, %s8, %s6
  $region1: #{tpu_custom_call.1} parent=0
    #allocation2 [shape = 'u8[65536]{0}', space=vmem, size = 0x10000, scoped, tag = 'input window, operand 0']
    #allocation3 [shape = 's32[2]{0}', space=sflag, size = 0x8, scoped, tag = 'scoped memory for tpu_custom_call.1']
    #allocation4 [shape = 's32[2]{0}', space=sflag, size = 0x8, scoped, tag = 'scoped memory for tpu_custom_call.1']
    #allocation5 [shape = 'u8[65536]{0}', space=vmem, size = 0x10000, scoped, tag = 'input window, operand 1']
    #allocation6 [shape = 's32[2]{0}', space=sflag, size = 0x8, scoped, tag = 'scoped memory for tpu_custom_call.1']
    #allocation7 [shape = 'u8[131072]{0}', space=vmem, size = 0x20000, scoped, tag = 'output window, operand 0']
    %10 = vsyncpa [#allocation3], 0
    %s11 = scalar_lea.sflag [#allocation3], 1
    %12 = vsyncpa %s11, 0
    %13 = vsyncpa [#allocation6], 0
    %s14 = scalar_lea.sflag [#allocation6], 1
    %15 = vsyncpa %s14, 0
    %16 = vsyncpa [#allocation4], 0
    %s17 = scalar_lea.sflag [#allocation4], 1
    %18 = vsyncpa %s17, 0
    loop: start=0, step=1, limit=6
    $region2: #{tpu_custom_call.1} parent=1 // loop_pre_header
      _
    $region3: #{tpu_custom_call.1} parent=1 // loop_header
      %s20 = sphi 0, %s24
      %p21 = scmp.ge.s32.totalorder %s20, 6
      %s27 = sphi 0, %s39
      %s28 = sphi 0, %s35
      %s29 = sphi 0, %s27
      %s30 = sphi 0, %s28
      %s31 = sphi 0, %s29
      %s32 = sphi 0, %s30
      %s42 = sphi 0, %s44
      %s45 = sphi 0, %s42
      %s46 = sphi 0, %s45
      %s62 = sphi 0, %s46
      %s70 = sphi 0, %s72
      %s73 = sphi 0, %s70
      %s74 = sphi 0, %s73
      %s90 = sphi 0, %s74
      %s96 = sphi 0, %s98
      %s99 = sphi 0, %s96
      %s100 = sphi 0, %s99
      %s116 = sphi 0, %s100
      %s122 = sphi 0, %s124
      %s125 = sphi 0, %s122
      %s126 = sphi 0, %s125
      %s142 = sphi 0, %s126
      %s148 = sphi 0, %s150
      %s151 = sphi 0, %s148
      %s152 = sphi 0, %s151
      %s168 = sphi 0, %s152
      %s174 = sphi 0, %s176
      %s177 = sphi 0, %s174
      %s178 = sphi 0, %s177
      %s194 = sphi 0, %s178
    $region4: #{tpu_custom_call.1} parent=1 // loop_header_branch
      %23 = sbr.rel (%p21) target = $region8
    $region5: #{tpu_custom_call.1} parent=1 // loop_body
      %s25 = ssub.s32 %s20, 1
      %s26 = ssub.s32 %s20, 2
      %s33 = sadd.s32 1, %s28
      %p34 = scmp.ge.s32.totalorder %s33, 2
      %s35 = scalar_select %p34, 0, %s33
      %s36 = sadd.s32 1, %s27
      %s37 = scalar_select %p34, %s36, %s27
      %p38 = scmp.ge.s32.totalorder %s37, 2
      %s39 = scalar_select %p38, 0, %s37
      %s40 = ssub.s32 %s28, %s35
      %p41 = scmp.eq.s32.totalorder %s40, 0
      %s43 = sadd.s32 %s42, 1
      %s44 = scalar_select %p41, %s42, %s43
      %p47 = pneg %p41
      %p48 = scmp.eq.s32.totalorder %s20, 3
      %p49 = por %p47, %p48
      %p50 = scmp.ne.s32.totalorder %s42, %s45
      %p51 = scmp.eq.s32.totalorder %s20, 0
      %p52 = por %p50, %p51
      %p53 = scmp.ne.s32.totalorder %s42, %s45
      %p54 = scmp.eq.s32.totalorder %s25, 3
      %p55 = por %p53, %p54
      %p56 = scmp.ne.s32.totalorder %s45, %s46
      %p57 = scmp.eq.s32.totalorder %s25, 0
      %p58 = por %p56, %p57
      %p59 = scmp.ne.s32.totalorder %s45, %s46
      %p60 = scmp.eq.s32.totalorder %s26, 3
      %p61 = por %p59, %p60
      %p63 = scmp.ne.s32.totalorder %s46, %s62
      %p64 = scmp.eq.s32.totalorder %s26, 0
      %p65 = por %p63, %p64
      %s66 = ssub.s32 %s28, %s35
      %s67 = ssub.s32 %s27, %s39
      %s68 = sor.u32 %s66, %s67
      %p69 = scmp.eq.s32.totalorder %s68, 0
      %s71 = sadd.s32 %s70, 1
      %s72 = scalar_select %p69, %s70, %s71
      %p75 = pneg %p69
      %p76 = scmp.eq.s32.totalorder %s20, 3
      %p77 = por %p75, %p76
      %p78 = scmp.ne.s32.totalorder %s70, %s73
      %p79 = scmp.eq.s32.totalorder %s20, 0
      %p80 = por %p78, %p79
      %p81 = scmp.ne.s32.totalorder %s70, %s73
      %p82 = scmp.eq.s32.totalorder %s25, 3
      %p83 = por %p81, %p82
      %p84 = scmp.ne.s32.totalorder %s73, %s74
      %p85 = scmp.eq.s32.totalorder %s25, 0
      %p86 = por %p84, %p85
      %p87 = scmp.ne.s32.totalorder %s73, %s74
      %p88 = scmp.eq.s32.totalorder %s26, 3
      %p89 = por %p87, %p88
      %p91 = scmp.ne.s32.totalorder %s74, %s90
      %p92 = scmp.eq.s32.totalorder %s26, 0
      %p93 = por %p91, %p92
      %s94 = ssub.s32 %s27, %s39
      %p95 = scmp.eq.s32.totalorder %s94, 0
      %s97 = sadd.s32 %s96, 1
      %s98 = scalar_select %p95, %s96, %s97
      %p101 = pneg %p95
      %p102 = scmp.eq.s32.totalorder %s20, 3
      %p103 = por %p101, %p102
      %p104 = scmp.ne.s32.totalorder %s96, %s99
      %p105 = scmp.eq.s32.totalorder %s20, 0
      %p106 = por %p104, %p105
      %p107 = scmp.ne.s32.totalorder %s96, %s99
      %p108 = scmp.eq.s32.totalorder %s25, 3
      %p109 = por %p107, %p108
      %p110 = scmp.ne.s32.totalorder %s99, %s100
      %p111 = scmp.eq.s32.totalorder %s25, 0
      %p112 = por %p110, %p111
      %p113 = scmp.ne.s32.totalorder %s99, %s100
      %p114 = scmp.eq.s32.totalorder %s26, 3
      %p115 = por %p113, %p114
      %p117 = scmp.ne.s32.totalorder %s100, %s116
      %p118 = scmp.eq.s32.totalorder %s26, 0
      %p119 = por %p117, %p118
      %s120 = ssub.s32 %s27, %s39
      %p121 = scmp.eq.s32.totalorder %s120, 0
      %s123 = sadd.s32 %s122, 1
      %s124 = scalar_select %p121, %s122, %s123
      %p127 = pneg %p121
      %p128 = scmp.eq.s32.totalorder %s20, 3
      %p129 = por %p127, %p128
      %p130 = scmp.ne.s32.totalorder %s122, %s125
      %p131 = scmp.eq.s32.totalorder %s20, 0
      %p132 = por %p130, %p131
      %p133 = scmp.ne.s32.totalorder %s122, %s125
      %p134 = scmp.eq.s32.totalorder %s25, 3
      %p135 = por %p133, %p134
      %p136 = scmp.ne.s32.totalorder %s125, %s126
      %p137 = scmp.eq.s32.totalorder %s25, 0
      %p138 = por %p136, %p137
      %p139 = scmp.ne.s32.totalorder %s125, %s126
      %p140 = scmp.eq.s32.totalorder %s26, 3
      %p141 = por %p139, %p140
      %p143 = scmp.ne.s32.totalorder %s126, %s142
      %p144 = scmp.eq.s32.totalorder %s26, 0
      %p145 = por %p143, %p144
      %s146 = ssub.s32 %s27, %s39
      %p147 = scmp.eq.s32.totalorder %s146, 0
      %s149 = sadd.s32 %s148, 1
      %s150 = scalar_select %p147, %s148, %s149
      %p153 = pneg %p147
      %p154 = scmp.eq.s32.totalorder %s20, 3
      %p155 = por %p153, %p154
      %p156 = scmp.ne.s32.totalorder %s148, %s151
      %p157 = scmp.eq.s32.totalorder %s20, 0
      %p158 = por %p156, %p157
      %p159 = scmp.ne.s32.totalorder %s148, %s151
      %p160 = scmp.eq.s32.totalorder %s25, 3
      %p161 = por %p159, %p160
      %p162 = scmp.ne.s32.totalorder %s151, %s152
      %p163 = scmp.eq.s32.totalorder %s25, 0
      %p164 = por %p162, %p163
      %p165 = scmp.ne.s32.totalorder %s151, %s152
      %p166 = scmp.eq.s32.totalorder %s26, 3
      %p167 = por %p165, %p166
      %p169 = scmp.ne.s32.totalorder %s152, %s168
      %p170 = scmp.eq.s32.totalorder %s26, 0
      %p171 = por %p169, %p170
      %s172 = ssub.s32 %s27, %s39
      %p173 = scmp.eq.s32.totalorder %s172, 0
      %s175 = sadd.s32 %s174, 1
      %s176 = scalar_select %p173, %s174, %s175
      %p179 = pneg %p173
      %p180 = scmp.eq.s32.totalorder %s20, 3
      %p181 = por %p179, %p180
      %p182 = scmp.ne.s32.totalorder %s174, %s177
      %p183 = scmp.eq.s32.totalorder %s20, 0
      %p184 = por %p182, %p183
      %p185 = scmp.ne.s32.totalorder %s174, %s177
      %p186 = scmp.eq.s32.totalorder %s25, 3
      %p187 = por %p185, %p186
      %p188 = scmp.ne.s32.totalorder %s177, %s178
      %p189 = scmp.eq.s32.totalorder %s25, 0
      %p190 = por %p188, %p189
      %p191 = scmp.ne.s32.totalorder %s177, %s178
      %p192 = scmp.eq.s32.totalorder %s26, 3
      %p193 = por %p191, %p192
      %p195 = scmp.ne.s32.totalorder %s178, %s194
      %p196 = scmp.eq.s32.totalorder %s26, 0
      %p197 = por %p195, %p196
      %p198 = scmp.le.s32.totalorder 1, %s20
      %p199 = scmp.lt.s32.totalorder %s20, 5
      %p200 = pnand %p198, %p199
      %p201 = pneg %p200
      // Predicated region
      $region9: #{tpu_custom_call.1} parent=5 // pred_check
        _
      $region10: #{tpu_custom_call.1} parent=5 // pred_check_branch
        %203 = sbr.rel (%p200) target = $region12
      $region11: #{tpu_custom_call.1} parent=5 // pred_region
        %s204 = ssub.s32 %s20, 1
      $region12: #{tpu_custom_call.1} parent=5 // pred_fallthru
        _
      %p205 = scmp.lt.s32.totalorder %s20, 4
      // Predicated region
      $region13: #{tpu_custom_call.1} parent=5 // pred_check
        %p206 = pneg %p205
      $region14: #{tpu_custom_call.1} parent=5 // pred_check_branch
        %208 = sbr.rel (%p206) target = $region16
      $region15: #{tpu_custom_call.1} parent=5 // pred_region
        // Predicated region
        $region17: #{tpu_custom_call.1} parent=15 // pred_check
          %p209 = pneg %p52
        $region18: #{tpu_custom_call.1} parent=15 // pred_check_branch
          %211 = sbr.rel (%p209) target = $region20
        $region19: #{tpu_custom_call.1} parent=15 // pred_region
          %s212 = sand.u32 %s42, 1
          %s213 = scalar_lea.sflag [#allocation3], %s212
          %s214 = sand.u32 %s42, 1
          %s215 = smul.addr %s214, 64
          %s216 = scalar_lea.vmem [#allocation2], %s215
          %s218 = ssub.s32 1024, 1024
          %219 = vsyncadd %s213, %s218
          %s220 = smul.addr %s28, 64
          %s221 = scalar_lea.hbm %s0, %s220
          %s222 = sshll.u32 %s216, 4
          %s223 = int_to_ptr.vmem [resolvable:$true] %s222
          %228 = dma.hbm_to_vmem [thread:$0]  %s221, 1024, %s223, %s213, 128, 64, 4
        $region20: #{tpu_custom_call.1} parent=15 // pred_fallthru
          _
        // Predicated region
        $region21: #{tpu_custom_call.1} parent=15 // pred_check
          %p229 = pneg %p80
        $region22: #{tpu_custom_call.1} parent=15 // pred_check_branch
          %231 = sbr.rel (%p229) target = $region24
        $region23: #{tpu_custom_call.1} parent=15 // pred_region
          %s232 = sand.u32 %s70, 1
          %s233 = scalar_lea.sflag [#allocation6], %s232
          %s234 = sand.u32 %s70, 1
          %s235 = smul.addr %s234, 64
          %s236 = scalar_lea.vmem [#allocation5], %s235
          %s237 = smul.u32 16, %s28
          %s239 = ssub.s32 1024, 1024
          %240 = vsyncadd %s233, %s239
          %s241 = smul.addr %s237, 2
          %s242 = sadd.s32 %s27, %s241
          %s243 = smul.addr %s242, 64
          %s244 = scalar_lea.hbm %s1, %s243
          %s245 = sshll.u32 %s236, 4
          %s246 = int_to_ptr.vmem [resolvable:$true] %s245
          %251 = dma.hbm_to_vmem [thread:$0]  %s244, 1024, %s246, %s233, 128, 64, 4
        $region24: #{tpu_custom_call.1} parent=15 // pred_fallthru
          _
        // Predicated region
        $region25: #{tpu_custom_call.1} parent=15 // pred_check
          %p252 = pneg %p106
        $region26: #{tpu_custom_call.1} parent=15 // pred_check_branch
          %254 = sbr.rel (%p252) target = $region28
        $region27: #{tpu_custom_call.1} parent=15 // pred_region
          %p255 = scmp.lt.s32.totalorder %s27, 1
          %s256 = scalar_select %p255, %s27, 1
          %s257 = scalar_lea.vmem %s2, %s256
        $region28: #{tpu_custom_call.1} parent=15 // pred_fallthru
          _
        // Predicated region
        $region29: #{tpu_custom_call.1} parent=15 // pred_check
          %p258 = pneg %p132
        $region30: #{tpu_custom_call.1} parent=15 // pred_check_branch
          %260 = sbr.rel (%p258) target = $region32
        $region31: #{tpu_custom_call.1} parent=15 // pred_region
          %p261 = scmp.lt.s32.totalorder %s27, 1
          %s262 = scalar_select %p261, %s27, 1
          %s263 = scalar_lea.vmem %s3, %s262
        $region32: #{tpu_custom_call.1} parent=15 // pred_fallthru
          _
        // Predicated region
        $region33: #{tpu_custom_call.1} parent=15 // pred_check
          %p264 = pneg %p158
        $region34: #{tpu_custom_call.1} parent=15 // pred_check_branch
          %266 = sbr.rel (%p264) target = $region36
        $region35: #{tpu_custom_call.1} parent=15 // pred_region
          %p267 = scmp.lt.s32.totalorder %s27, 1
          %s268 = scalar_select %p267, %s27, 1
          %s269 = scalar_lea.vmem %s4, %s268
        $region36: #{tpu_custom_call.1} parent=15 // pred_fallthru
          _
      $region16: #{tpu_custom_call.1} parent=5 // pred_fallthru
        _
      %p270 = scmp.le.s32.totalorder 1, %s20
      %p271 = scmp.lt.s32.totalorder %s20, 5
      %p272 = pnand %p270, %p271
      %p273 = pneg %p272
      // Predicated region
      $region37: #{tpu_custom_call.1} parent=5 // pred_check
        _
      $region38: #{tpu_custom_call.1} parent=5 // pred_check_branch
        %275 = sbr.rel (%p272) target = $region40
      $region39: #{tpu_custom_call.1} parent=5 // pred_region
        %s276 = ssub.s32 %s20, 1
        %s277 = sand.u32 %s45, 1
        %s278 = scalar_lea.sflag [#allocation3], %s277
        %s279 = sand.u32 %s45, 1
        %s280 = smul.addr %s279, 64
        %s281 = scalar_lea.vmem [#allocation2], %s280
        // Predicated region
        $region41: #{tpu_custom_call.1} parent=39 // pred_check
          %p282 = pneg %p58
        $region42: #{tpu_custom_call.1} parent=39 // pred_check_branch
          %284 = sbr.rel (%p282) target = $region44
        $region43: #{tpu_custom_call.1} parent=39 // pred_region
          %285 = dma.done %s278, 1024
        $region44: #{tpu_custom_call.1} parent=39 // pred_fallthru
          _
        %s286 = sand.u32 %s73, 1
        %s287 = scalar_lea.sflag [#allocation6], %s286
        %s288 = sand.u32 %s73, 1
        %s289 = smul.addr %s288, 64
        %s290 = scalar_lea.vmem [#allocation5], %s289
        // Predicated region
        $region45: #{tpu_custom_call.1} parent=39 // pred_check
          %p291 = pneg %p86
        $region46: #{tpu_custom_call.1} parent=39 // pred_check_branch
          %293 = sbr.rel (%p291) target = $region48
        $region47: #{tpu_custom_call.1} parent=39 // pred_region
          %294 = dma.done %s287, 1024
        $region48: #{tpu_custom_call.1} parent=39 // pred_fallthru
          _
        %s295 = sand.u32 %s45, 1
        %s296 = scalar_lea.sflag [#allocation3], %s295
        %s297 = sand.u32 %s45, 1
        %s298 = smul.addr %s297, 64
        %s299 = scalar_lea.vmem [#allocation2], %s298
        %p300 = pneg %p58
        %p301 = pneg %p55
        %s302 = sand.u32 %s73, 1
        %s303 = scalar_lea.sflag [#allocation6], %s302
        %s304 = sand.u32 %s73, 1
        %s305 = smul.addr %s304, 64
        %s306 = scalar_lea.vmem [#allocation5], %s305
        %p307 = pneg %p86
        %p308 = pneg %p83
        %p309 = scmp.lt.s32.totalorder %s29, 1
        %s310 = scalar_select %p309, %s29, 1
        %s311 = scalar_lea.vmem %s2, %s310
        %p312 = pneg %p112
        %p313 = pneg %p109
        %p314 = scmp.lt.s32.totalorder %s29, 1
        %s315 = scalar_select %p314, %s29, 1
        %s316 = scalar_lea.vmem %s3, %s315
        %p317 = pneg %p138
        %p318 = pneg %p135
        %p319 = scmp.lt.s32.totalorder %s29, 1
        %s320 = scalar_select %p319, %s29, 1
        %s321 = scalar_lea.vmem %s4, %s320
        %p322 = pneg %p164
        %p323 = pneg %p161
        %p324 = pneg %p190
        %p325 = pneg %p187
        %s326 = sand.u32 %s177, 1
        %s327 = scalar_lea.sflag [#allocation4], %s326
        %s328 = sand.u32 %s177, 1
        %s329 = smul.addr %s328, 128
        %s330 = scalar_lea.vmem [#allocation7], %s329
        %s331 = smul.u32 16, %s30
        %p332 = scmp.lt.s32.totalorder %s29, 1
        %s333 = scalar_select %p332, %s29, 1
        %s334 = scalar_lea.vmem %s2, %s333
        %p335 = scmp.lt.s32.totalorder %s29, 1
        %s336 = scalar_select %p335, %s29, 1
        %s337 = scalar_lea.vmem %s3, %s336
        %p338 = scmp.lt.s32.totalorder %s29, 1
        %s339 = scalar_select %p338, %s29, 1
        %s340 = scalar_lea.vmem %s4, %s339
        %v342 = vld [vmem:[%s281] sm:$0xf]
        %v343 = vld [vmem:[%s281 + $0x4] sm:$0xf]
        %v344 = vld [vmem:[%s281 + $0x8] sm:$0xf]
        %v345 = vld [vmem:[%s281 + $0xc] sm:$0xf]
        %v346 = vld [vmem:[%s281 + $0x10] sm:$0xf]
        %v347 = vld [vmem:[%s281 + $0x14] sm:$0xf]
        %v348 = vld [vmem:[%s281 + $0x18] sm:$0xf]
        %v349 = vld [vmem:[%s281 + $0x1c] sm:$0xf]
        %v350 = vld [vmem:[%s281 + $0x20] sm:$0xf]
        %v351 = vld [vmem:[%s281 + $0x24] sm:$0xf]
        %v352 = vld [vmem:[%s281 + $0x28] sm:$0xf]
        %v353 = vld [vmem:[%s281 + $0x2c] sm:$0xf]
        %v354 = vld [vmem:[%s281 + $0x30] sm:$0xf]
        %v355 = vld [vmem:[%s281 + $0x34] sm:$0xf]
        %v356 = vld [vmem:[%s281 + $0x38] sm:$0xf]
        %v357 = vld [vmem:[%s281 + $0x3c] sm:$0xf]
        %v358 = vld [vmem:[%s290] sm:$0xf]
        %v359 = vld [vmem:[%s290 + $0x4] sm:$0xf]
        %v360 = vld [vmem:[%s290 + $0x8] sm:$0xf]
        %v361 = vld [vmem:[%s290 + $0xc] sm:$0xf]
        %v362 = vld [vmem:[%s290 + $0x10] sm:$0xf]
        %v363 = vld [vmem:[%s290 + $0x14] sm:$0xf]
        %v364 = vld [vmem:[%s290 + $0x18] sm:$0xf]
        %v365 = vld [vmem:[%s290 + $0x1c] sm:$0xf]
        %v366 = vld [vmem:[%s290 + $0x20] sm:$0xf]
        %v367 = vld [vmem:[%s290 + $0x24] sm:$0xf]
        %v368 = vld [vmem:[%s290 + $0x28] sm:$0xf]
        %v369 = vld [vmem:[%s290 + $0x2c] sm:$0xf]
        %v370 = vld [vmem:[%s290 + $0x30] sm:$0xf]
        %v371 = vld [vmem:[%s290 + $0x34] sm:$0xf]
        %v372 = vld [vmem:[%s290 + $0x38] sm:$0xf]
        %v373 = vld [vmem:[%s290 + $0x3c] sm:$0xf]
        %v390 = vunpack.c.l.b16 %v342
        %v391 = vunpack.c.l.b16 %v343
        %v392 = vunpack.c.l.b16 %v344
        %v393 = vunpack.c.l.b16 %v345
        %v394 = vunpack.c.l.b16 %v346
        %v395 = vunpack.c.l.b16 %v347
        %v396 = vunpack.c.l.b16 %v348
        %v397 = vunpack.c.l.b16 %v349
        %v398 = vunpack.c.l.b16 %v350
        %v399 = vunpack.c.l.b16 %v351
        %v400 = vunpack.c.l.b16 %v352
        %v401 = vunpack.c.l.b16 %v353
        %v402 = vunpack.c.l.b16 %v354
        %v403 = vunpack.c.l.b16 %v355
        %v404 = vunpack.c.l.b16 %v356
        %v405 = vunpack.c.l.b16 %v357
        %v406 = vpack.c.b16 %v391, %v390
        %v407 = vpack.c.b16 %v393, %v392
        %v408 = vpack.c.b16 %v395, %v394
        %v409 = vpack.c.b16 %v397, %v396
        %v410 = vpack.c.b16 %v399, %v398
        %v411 = vpack.c.b16 %v401, %v400
        %v412 = vpack.c.b16 %v403, %v402
        %v413 = vpack.c.b16 %v405, %v404
        %v438 = vunpack.c.l.b16 %v358
        %v439 = vunpack.c.l.b16 %v359
        %v440 = vunpack.c.l.b16 %v360
        %v441 = vunpack.c.l.b16 %v361
        %v442 = vunpack.c.l.b16 %v362
        %v443 = vunpack.c.l.b16 %v363
        %v444 = vunpack.c.l.b16 %v364
        %v445 = vunpack.c.l.b16 %v365
        %v446 = vunpack.c.l.b16 %v366
        %v447 = vunpack.c.l.b16 %v367
        %v448 = vunpack.c.l.b16 %v368
        %v449 = vunpack.c.l.b16 %v369
        %v450 = vunpack.c.l.b16 %v370
        %v451 = vunpack.c.l.b16 %v371
        %v452 = vunpack.c.l.b16 %v372
        %v453 = vunpack.c.l.b16 %v373
        %v454 = vpack.c.b16 %v439, %v438
        %v455 = vpack.c.b16 %v441, %v440
        %v456 = vpack.c.b16 %v443, %v442
        %v457 = vpack.c.b16 %v445, %v444
        %v458 = vpack.c.b16 %v447, %v446
        %v459 = vpack.c.b16 %v449, %v448
        %v460 = vpack.c.b16 %v451, %v450
        %v461 = vpack.c.b16 %v453, %v452
        %470 = vmatprep.subr.bf16.mxu0 0
        %471 = vmatpush1.bf16.msra.mxu0 %v461
        %472 = vmatprep.subr.bf16.mxu0 0
        %473 = vmatpush1.bf16.msra.mxu0 %v460
        %474 = vmatprep.subr.bf16.mxu0 0
        %475 = vmatpush1.bf16.msra.mxu0 %v459
        %476 = vmatprep.subr.bf16.mxu0 0
        %477 = vmatpush1.bf16.msra.mxu0 %v458
        %478 = vmatprep.subr.bf16.mxu0 0
        %479 = vmatpush1.bf16.msra.mxu0 %v457
        %480 = vmatprep.subr.bf16.mxu0 0
        %481 = vmatpush1.bf16.msra.mxu0 %v456
        %482 = vmatprep.subr.bf16.mxu0 0
        %483 = vmatpush1.bf16.msra.mxu0 %v455
        %484 = vmatprep.subr.bf16.mxu0 0
        %485 = vmatpush1.bf16.msra.mxu0 %v454
        %486 = vmatprep.subr.bf16.mxu0 0
        %487 = vmatpush2.bf16.msra.mxu0 0
        %488 = vmatprep.subr.bf16.mxu0 0
        %489 = vmatpush2.bf16.msra.mxu0 0
        %490 = vmatprep.subr.bf16.mxu0 0
        %491 = vmatpush2.bf16.msra.mxu0 0
        %492 = vmatprep.subr.bf16.mxu0 0
        %493 = vmatpush2.bf16.msra.mxu0 0
        %494 = vmatprep.subr.bf16.mxu0 0
        %495 = vmatpush2.bf16.msra.mxu0 0
        %496 = vmatprep.subr.bf16.mxu0 0
        %497 = vmatpush2.bf16.msra.mxu0 0
        %498 = vmatprep.subr.bf16.mxu0 0
        %499 = vmatpush2.bf16.msra.mxu0 0
        %500 = vmatprep.subr.bf16.mxu0 0
        %501 = vmatpush2.bf16.msra.mxu0 0
        %502 = vmatprep.mubr.bf16.mxu0 0
        %503 = vmatmul.mubr.bf16.gmra.mxu0 %v406
        %v504 = vpop.f32.mrf.mxu0
        %v505 = vadd.f32 0.0, %v504
        %v506 = vpop.f32.mrf.mxu0
        %v507 = vpop.f32.mrf.mxu0
        %v508 = vadd.f32 0.0, %v507
        %v509 = vpop.f32.mrf.mxu0
        %510 = vmatprep.mubr.bf16.mxu0 0
        %511 = vmatmul.mubr.bf16.gmra.mxu0 %v407
        %v512 = vpop.f32.mrf.mxu0
        %v513 = vadd.f32 0.0, %v512
        %v514 = vpop.f32.mrf.mxu0
        %v515 = vpop.f32.mrf.mxu0
        %v516 = vadd.f32 0.0, %v515
        %v517 = vpop.f32.mrf.mxu0
        %518 = vmatprep.mubr.bf16.mxu0 0
        %519 = vmatmul.mubr.bf16.gmra.mxu0 %v408
        %v520 = vpop.f32.mrf.mxu0
        %v521 = vadd.f32 0.0, %v520
        %v522 = vpop.f32.mrf.mxu0
        %v523 = vpop.f32.mrf.mxu0
        %v524 = vadd.f32 0.0, %v523
        %v525 = vpop.f32.mrf.mxu0
        %526 = vmatprep.mubr.bf16.mxu0 0
        %527 = vmatmul.mubr.bf16.gmra.mxu0 %v409
        %v528 = vpop.f32.mrf.mxu0
        %v529 = vadd.f32 0.0, %v528
        %v530 = vpop.f32.mrf.mxu0
        %v531 = vpop.f32.mrf.mxu0
        %v532 = vadd.f32 0.0, %v531
        %v533 = vpop.f32.mrf.mxu0
        %534 = vmatprep.mubr.bf16.mxu0 0
        %535 = vmatmul.mubr.bf16.gmra.mxu0 %v410
        %v536 = vpop.f32.mrf.mxu0
        %v537 = vadd.f32 0.0, %v536
        %v538 = vpop.f32.mrf.mxu0
        %v539 = vpop.f32.mrf.mxu0
        %v540 = vadd.f32 0.0, %v539
        %v541 = vpop.f32.mrf.mxu0
        %542 = vmatprep.mubr.bf16.mxu0 0
        %543 = vmatmul.mubr.bf16.gmra.mxu0 %v411
        %v544 = vpop.f32.mrf.mxu0
        %v545 = vadd.f32 0.0, %v544
        %v546 = vpop.f32.mrf.mxu0
        %v547 = vpop.f32.mrf.mxu0
        %v548 = vadd.f32 0.0, %v547
        %v549 = vpop.f32.mrf.mxu0
        %550 = vmatprep.mubr.bf16.mxu0 0
        %551 = vmatmul.mubr.bf16.gmra.mxu0 %v412
        %v552 = vpop.f32.mrf.mxu0
        %v553 = vadd.f32 0.0, %v552
        %v554 = vpop.f32.mrf.mxu0
        %v555 = vpop.f32.mrf.mxu0
        %v556 = vadd.f32 0.0, %v555
        %v557 = vpop.f32.mrf.mxu0
        %558 = vmatprep.mubr.bf16.mxu0 0
        %559 = vmatmul.mubr.bf16.gmra.mxu0 %v413
        %v560 = vpop.f32.mrf.mxu0
        %v561 = vadd.f32 0.0, %v560
        %v562 = vpop.f32.mrf.mxu0
        %v563 = vpop.f32.mrf.mxu0
        %v564 = vadd.f32 0.0, %v563
        %v565 = vpop.f32.mrf.mxu0
        %566 = vdwg.mxu0
        %p567 = scmp.eq.s32.totalorder %s30, 0
        // Predicated region
        $region49: #{tpu_custom_call.1} parent=39 // pred_check
          %p568 = pneg %p567
        $region50: #{tpu_custom_call.1} parent=39 // pred_check_branch
          %570 = sbr.rel (%p568) target = $region52
        $region51: #{tpu_custom_call.1} parent=39 // pred_region
          %571 = vst [vmem:[%s330] sm:$0xff] %v505
          %572 = vst [vmem:[%s330 + $0x8] sm:$0xff] %v508
          %573 = vst [vmem:[%s330 + $0x10] sm:$0xff] %v513
          %574 = vst [vmem:[%s330 + $0x18] sm:$0xff] %v516
          %575 = vst [vmem:[%s330 + $0x20] sm:$0xff] %v521
          %576 = vst [vmem:[%s330 + $0x28] sm:$0xff] %v524
          %577 = vst [vmem:[%s330 + $0x30] sm:$0xff] %v529
          %578 = vst [vmem:[%s330 + $0x38] sm:$0xff] %v532
          %579 = vst [vmem:[%s330 + $0x40] sm:$0xff] %v537
          %580 = vst [vmem:[%s330 + $0x48] sm:$0xff] %v540
          %581 = vst [vmem:[%s330 + $0x50] sm:$0xff] %v545
          %582 = vst [vmem:[%s330 + $0x58] sm:$0xff] %v548
          %583 = vst [vmem:[%s330 + $0x60] sm:$0xff] %v553
          %584 = vst [vmem:[%s330 + $0x68] sm:$0xff] %v556
          %585 = vst [vmem:[%s330 + $0x70] sm:$0xff] %v561
          %586 = vst [vmem:[%s330 + $0x78] sm:$0xff] %v564
        $region52: #{tpu_custom_call.1} parent=39 // pred_fallthru
          _
        %p587 = scmp.gt.s32.totalorder %s30, 0
        // Predicated region
        $region53: #{tpu_custom_call.1} parent=39 // pred_check
          %p588 = pneg %p587
        $region54: #{tpu_custom_call.1} parent=39 // pred_check_branch
          %590 = sbr.rel (%p588) target = $region56
        $region55: #{tpu_custom_call.1} parent=39 // pred_region
          %v591 = vld [vmem:[%s330] sm:$0xff]
          %v592 = vld [vmem:[%s330 + $0x8] sm:$0xff]
          %v593 = vld [vmem:[%s330 + $0x10] sm:$0xff]
          %v594 = vld [vmem:[%s330 + $0x18] sm:$0xff]
          %v595 = vld [vmem:[%s330 + $0x20] sm:$0xff]
          %v596 = vld [vmem:[%s330 + $0x28] sm:$0xff]
          %v597 = vld [vmem:[%s330 + $0x30] sm:$0xff]
          %v598 = vld [vmem:[%s330 + $0x38] sm:$0xff]
          %v599 = vld [vmem:[%s330 + $0x40] sm:$0xff]
          %v600 = vld [vmem:[%s330 + $0x48] sm:$0xff]
          %v601 = vld [vmem:[%s330 + $0x50] sm:$0xff]
          %v602 = vld [vmem:[%s330 + $0x58] sm:$0xff]
          %v603 = vld [vmem:[%s330 + $0x60] sm:$0xff]
          %v604 = vld [vmem:[%s330 + $0x68] sm:$0xff]
          %v605 = vld [vmem:[%s330 + $0x70] sm:$0xff]
          %v606 = vld [vmem:[%s330 + $0x78] sm:$0xff]
          %v607 = vadd.f32 %v591, %v505
          %v608 = vadd.f32 %v592, %v508
          %v609 = vadd.f32 %v593, %v513
          %v610 = vadd.f32 %v594, %v516
          %v611 = vadd.f32 %v595, %v521
          %v612 = vadd.f32 %v596, %v524
          %v613 = vadd.f32 %v597, %v529
          %v614 = vadd.f32 %v598, %v532
          %v615 = vadd.f32 %v599, %v537
          %v616 = vadd.f32 %v600, %v540
          %v617 = vadd.f32 %v601, %v545
          %v618 = vadd.f32 %v602, %v548
          %v619 = vadd.f32 %v603, %v553
          %v620 = vadd.f32 %v604, %v556
          %v621 = vadd.f32 %v605, %v561
          %v622 = vadd.f32 %v606, %v564
          %623 = vst [vmem:[%s330] sm:$0xff] %v607
          %624 = vst [vmem:[%s330 + $0x8] sm:$0xff] %v608
          %625 = vst [vmem:[%s330 + $0x10] sm:$0xff] %v609
          %626 = vst [vmem:[%s330 + $0x18] sm:$0xff] %v610
          %627 = vst [vmem:[%s330 + $0x20] sm:$0xff] %v611
          %628 = vst [vmem:[%s330 + $0x28] sm:$0xff] %v612
          %629 = vst [vmem:[%s330 + $0x30] sm:$0xff] %v613
          %630 = vst [vmem:[%s330 + $0x38] sm:$0xff] %v614
          %631 = vst [vmem:[%s330 + $0x40] sm:$0xff] %v615
          %632 = vst [vmem:[%s330 + $0x48] sm:$0xff] %v616
          %633 = vst [vmem:[%s330 + $0x50] sm:$0xff] %v617
          %634 = vst [vmem:[%s330 + $0x58] sm:$0xff] %v618
          %635 = vst [vmem:[%s330 + $0x60] sm:$0xff] %v619
          %636 = vst [vmem:[%s330 + $0x68] sm:$0xff] %v620
          %637 = vst [vmem:[%s330 + $0x70] sm:$0xff] %v621
          %638 = vst [vmem:[%s330 + $0x78] sm:$0xff] %v622
        $region56: #{tpu_custom_call.1} parent=39 // pred_fallthru
          _
        %p639 = scmp.eq.s32.totalorder %s30, 1
        // Predicated region
        $region57: #{tpu_custom_call.1} parent=39 // pred_check
          %p640 = pneg %p639
        $region58: #{tpu_custom_call.1} parent=39 // pred_check_branch
          %642 = sbr.rel (%p640) target = $region60
        $region59: #{tpu_custom_call.1} parent=39 // pred_region
          %v643 = vld [vmem:[%s330] sm:$0xff]
          %v644 = vld [vmem:[%s330 + $0x8] sm:$0xff]
          %v645 = vld [vmem:[%s330 + $0x10] sm:$0xff]
          %v646 = vld [vmem:[%s330 + $0x18] sm:$0xff]
          %v647 = vld [vmem:[%s330 + $0x20] sm:$0xff]
          %v648 = vld [vmem:[%s330 + $0x28] sm:$0xff]
          %v649 = vld [vmem:[%s330 + $0x30] sm:$0xff]
          %v650 = vld [vmem:[%s330 + $0x38] sm:$0xff]
          %v651 = vld [vmem:[%s330 + $0x40] sm:$0xff]
          %v652 = vld [vmem:[%s330 + $0x48] sm:$0xff]
          %v653 = vld [vmem:[%s330 + $0x50] sm:$0xff]
          %v654 = vld [vmem:[%s330 + $0x58] sm:$0xff]
          %v655 = vld [vmem:[%s330 + $0x60] sm:$0xff]
          %v656 = vld [vmem:[%s330 + $0x68] sm:$0xff]
          %v657 = vld [vmem:[%s330 + $0x70] sm:$0xff]
          %v658 = vld [vmem:[%s330 + $0x78] sm:$0xff]
          %v659 = vld [vmem:[%s334] sm:$0x1]
          %v661 = vlaneseq
          %v662 = vshrl.u32 %v661, 7
          %v663 = vsub.s32 0, %v662
          %v664 = vrot.slane %v659, %v663
          %v666 = vadd.f32 %v643, %v664
          %v667 = vadd.f32 %v644, %v664
          %v668 = vadd.f32 %v645, %v664
          %v669 = vadd.f32 %v646, %v664
          %v670 = vadd.f32 %v647, %v664
          %v671 = vadd.f32 %v648, %v664
          %v672 = vadd.f32 %v649, %v664
          %v673 = vadd.f32 %v650, %v664
          %v674 = vadd.f32 %v651, %v664
          %v675 = vadd.f32 %v652, %v664
          %v676 = vadd.f32 %v653, %v664
          %v677 = vadd.f32 %v654, %v664
          %v678 = vadd.f32 %v655, %v664
          %v679 = vadd.f32 %v656, %v664
          %v680 = vadd.f32 %v657, %v664
          %v681 = vadd.f32 %v658, %v664
          %v682 = vmax.f32 %v666, 0.0
          %v683 = vmax.f32 %v667, 0.0
          %v684 = vmax.f32 %v668, 0.0
          %v685 = vmax.f32 %v669, 0.0
          %v686 = vmax.f32 %v670, 0.0
          %v687 = vmax.f32 %v671, 0.0
          %v688 = vmax.f32 %v672, 0.0
          %v689 = vmax.f32 %v673, 0.0
          %v690 = vmax.f32 %v674, 0.0
          %v691 = vmax.f32 %v675, 0.0
          %v692 = vmax.f32 %v676, 0.0
          %v693 = vmax.f32 %v677, 0.0
          %v694 = vmax.f32 %v678, 0.0
          %v695 = vmax.f32 %v679, 0.0
          %v696 = vmax.f32 %v680, 0.0
          %v697 = vmax.f32 %v681, 0.0
          %698 = vst [vmem:[%s330] sm:$0xff] %v682
          %699 = vst [vmem:[%s330 + $0x8] sm:$0xff] %v683
          %700 = vst [vmem:[%s330 + $0x10] sm:$0xff] %v684
          %701 = vst [vmem:[%s330 + $0x18] sm:$0xff] %v685
          %702 = vst [vmem:[%s330 + $0x20] sm:$0xff] %v686
          %703 = vst [vmem:[%s330 + $0x28] sm:$0xff] %v687
          %704 = vst [vmem:[%s330 + $0x30] sm:$0xff] %v688
          %705 = vst [vmem:[%s330 + $0x38] sm:$0xff] %v689
          %706 = vst [vmem:[%s330 + $0x40] sm:$0xff] %v690
          %707 = vst [vmem:[%s330 + $0x48] sm:$0xff] %v691
          %708 = vst [vmem:[%s330 + $0x50] sm:$0xff] %v692
          %709 = vst [vmem:[%s330 + $0x58] sm:$0xff] %v693
          %710 = vst [vmem:[%s330 + $0x60] sm:$0xff] %v694
          %711 = vst [vmem:[%s330 + $0x68] sm:$0xff] %v695
          %712 = vst [vmem:[%s330 + $0x70] sm:$0xff] %v696
          %713 = vst [vmem:[%s330 + $0x78] sm:$0xff] %v697
          %v714 = vld [vmem:[%s330] sm:$0xff]
          %v715 = vld [vmem:[%s330 + $0x8] sm:$0xff]
          %v716 = vld [vmem:[%s330 + $0x10] sm:$0xff]
          %v717 = vld [vmem:[%s330 + $0x18] sm:$0xff]
          %v718 = vld [vmem:[%s330 + $0x20] sm:$0xff]
          %v719 = vld [vmem:[%s330 + $0x28] sm:$0xff]
          %v720 = vld [vmem:[%s330 + $0x30] sm:$0xff]
          %v721 = vld [vmem:[%s330 + $0x38] sm:$0xff]
          %v722 = vld [vmem:[%s330 + $0x40] sm:$0xff]
          %v723 = vld [vmem:[%s330 + $0x48] sm:$0xff]
          %v724 = vld [vmem:[%s330 + $0x50] sm:$0xff]
          %v725 = vld [vmem:[%s330 + $0x58] sm:$0xff]
          %v726 = vld [vmem:[%s330 + $0x60] sm:$0xff]
          %v727 = vld [vmem:[%s330 + $0x68] sm:$0xff]
          %v728 = vld [vmem:[%s330 + $0x70] sm:$0xff]
          %v729 = vld [vmem:[%s330 + $0x78] sm:$0xff]
          %v730 = vadd.f32 %v714, %v715
          %v731 = vadd.f32 %v730, %v716
          %v732 = vadd.f32 %v731, %v717
          %v733 = vadd.f32 %v732, %v718
          %v734 = vadd.f32 %v733, %v719
          %v735 = vadd.f32 %v734, %v720
          %v736 = vadd.f32 %v735, %v721
          %v737 = vadd.f32 %v736, %v722
          %v738 = vadd.f32 %v737, %v723
          %v739 = vadd.f32 %v738, %v724
          %v740 = vadd.f32 %v739, %v725
          %v741 = vadd.f32 %v740, %v726
          %v742 = vadd.f32 %v741, %v727
          %v743 = vadd.f32 %v742, %v728
          %v744 = vadd.f32 %v743, %v729
          %v745 = vrot.slane %v744, 4
          %v746 = vadd.f32 %v744, %v745
          %v747 = vrot.slane %v746, 2
          %v748 = vadd.f32 %v746, %v747
          %v749 = vrot.slane %v748, 1
          %v750 = vadd.f32 %v748, %v749
          %v751 = vmul.f32 %v714, %v714
          %v752 = vmul.f32 %v715, %v715
          %v753 = vmul.f32 %v716, %v716
          %v754 = vmul.f32 %v717, %v717
          %v755 = vmul.f32 %v718, %v718
          %v756 = vmul.f32 %v719, %v719
          %v757 = vmul.f32 %v720, %v720
          %v758 = vmul.f32 %v721, %v721
          %v759 = vmul.f32 %v722, %v722
          %v760 = vmul.f32 %v723, %v723
          %v761 = vmul.f32 %v724, %v724
          %v762 = vmul.f32 %v725, %v725
          %v763 = vmul.f32 %v726, %v726
          %v764 = vmul.f32 %v727, %v727
          %v765 = vmul.f32 %v728, %v728
          %v766 = vmul.f32 %v729, %v729
          %v767 = vadd.f32 %v751, %v752
          %v768 = vadd.f32 %v767, %v753
          %v769 = vadd.f32 %v768, %v754
          %v770 = vadd.f32 %v769, %v755
          %v771 = vadd.f32 %v770, %v756
          %v772 = vadd.f32 %v771, %v757
          %v773 = vadd.f32 %v772, %v758
          %v774 = vadd.f32 %v773, %v759
          %v775 = vadd.f32 %v774, %v760
          %v776 = vadd.f32 %v775, %v761
          %v777 = vadd.f32 %v776, %v762
          %v778 = vadd.f32 %v777, %v763
          %v779 = vadd.f32 %v778, %v764
          %v780 = vadd.f32 %v779, %v765
          %v781 = vadd.f32 %v780, %v766
          %v782 = vrot.slane %v781, 4
          %v783 = vadd.f32 %v781, %v782
          %v784 = vrot.slane %v783, 2
          %v785 = vadd.f32 %v783, %v784
          %v786 = vrot.slane %v785, 1
          %v787 = vadd.f32 %v785, %v786
          %v788 = vmul.f32 %v750, 0.0078125
          %v789 = vmul.f32 %v787, 0.0078125
          %v790 = vmul.f32 %v788, %v788
          %v791 = vsub.f32 %v789, %v790
          %v792 = vmax.f32 %v791, 0.0
          %v793 = vadd.f32 %v792, 1e-05
          %v794 = vrsqrt.pop %v793
          %v795 = vld [vmem:[%s337] sm:$0x1]
          %v796 = vmul.f32 %v794, %v795
          %v797 = vsub.f32 %v714, %v788
          %v798 = vsub.f32 %v715, %v788
          %v799 = vsub.f32 %v716, %v788
          %v800 = vsub.f32 %v717, %v788
          %v801 = vsub.f32 %v718, %v788
          %v802 = vsub.f32 %v719, %v788
          %v803 = vsub.f32 %v720, %v788
          %v804 = vsub.f32 %v721, %v788
          %v805 = vsub.f32 %v722, %v788
          %v806 = vsub.f32 %v723, %v788
          %v807 = vsub.f32 %v724, %v788
          %v808 = vsub.f32 %v725, %v788
          %v809 = vsub.f32 %v726, %v788
          %v810 = vsub.f32 %v727, %v788
          %v811 = vsub.f32 %v728, %v788
          %v812 = vsub.f32 %v729, %v788
          %v813 = vlaneseq
          %v814 = vshrl.u32 %v813, 7
          %v815 = vsub.s32 0, %v814
          %v816 = vrot.slane %v796, %v815
          %v817 = vmul.f32 %v797, %v816
          %v818 = vmul.f32 %v798, %v816
          %v819 = vmul.f32 %v799, %v816
          %v820 = vmul.f32 %v800, %v816
          %v821 = vmul.f32 %v801, %v816
          %v822 = vmul.f32 %v802, %v816
          %v823 = vmul.f32 %v803, %v816
          %v824 = vmul.f32 %v804, %v816
          %v825 = vmul.f32 %v805, %v816
          %v826 = vmul.f32 %v806, %v816
          %v827 = vmul.f32 %v807, %v816
          %v828 = vmul.f32 %v808, %v816
          %v829 = vmul.f32 %v809, %v816
          %v830 = vmul.f32 %v810, %v816
          %v831 = vmul.f32 %v811, %v816
          %v832 = vmul.f32 %v812, %v816
          %v833 = vld [vmem:[%s340] sm:$0x1]
          %v835 = vlaneseq
          %v836 = vshrl.u32 %v835, 7
          %v837 = vsub.s32 0, %v836
          %v838 = vrot.slane %v833, %v837
          %v840 = vadd.f32 %v817, %v838
          %v841 = vadd.f32 %v818, %v838
          %v842 = vadd.f32 %v819, %v838
          %v843 = vadd.f32 %v820, %v838
          %v844 = vadd.f32 %v821, %v838
          %v845 = vadd.f32 %v822, %v838
          %v846 = vadd.f32 %v823, %v838
          %v847 = vadd.f32 %v824, %v838
          %v848 = vadd.f32 %v825, %v838
          %v849 = vadd.f32 %v826, %v838
          %v850 = vadd.f32 %v827, %v838
          %v851 = vadd.f32 %v828, %v838
          %v852 = vadd.f32 %v829, %v838
          %v853 = vadd.f32 %v830, %v838
          %v854 = vadd.f32 %v831, %v838
          %v855 = vadd.f32 %v832, %v838
          %856 = vst [vmem:[%s330] sm:$0xff] %v840
          %857 = vst [vmem:[%s330 + $0x8] sm:$0xff] %v841
          %858 = vst [vmem:[%s330 + $0x10] sm:$0xff] %v842
          %859 = vst [vmem:[%s330 + $0x18] sm:$0xff] %v843
          %860 = vst [vmem:[%s330 + $0x20] sm:$0xff] %v844
          %861 = vst [vmem:[%s330 + $0x28] sm:$0xff] %v845
          %862 = vst [vmem:[%s330 + $0x30] sm:$0xff] %v846
          %863 = vst [vmem:[%s330 + $0x38] sm:$0xff] %v847
          %864 = vst [vmem:[%s330 + $0x40] sm:$0xff] %v848
          %865 = vst [vmem:[%s330 + $0x48] sm:$0xff] %v849
          %866 = vst [vmem:[%s330 + $0x50] sm:$0xff] %v850
          %867 = vst [vmem:[%s330 + $0x58] sm:$0xff] %v851
          %868 = vst [vmem:[%s330 + $0x60] sm:$0xff] %v852
          %869 = vst [vmem:[%s330 + $0x68] sm:$0xff] %v853
          %870 = vst [vmem:[%s330 + $0x70] sm:$0xff] %v854
          %871 = vst [vmem:[%s330 + $0x78] sm:$0xff] %v855
        $region60: #{tpu_custom_call.1} parent=39 // pred_fallthru
          _
        %s872 = sand.u32 %s177, 1
        %s873 = scalar_lea.sflag [#allocation4], %s872
        %s874 = sand.u32 %s177, 1
        %s875 = smul.addr %s874, 128
        %s876 = scalar_lea.vmem [#allocation7], %s875
        // Predicated region
        $region61: #{tpu_custom_call.1} parent=39 // pred_check
          %p877 = pneg %p187
        $region62: #{tpu_custom_call.1} parent=39 // pred_check_branch
          %879 = sbr.rel (%p877) target = $region64
        $region63: #{tpu_custom_call.1} parent=39 // pred_region
          %s881 = ssub.s32 2048, 2048
          %882 = vsyncadd %s873, %s881
          %s883 = smul.addr %s29, 128
          %s884 = scalar_lea.hbm %s5, %s883
          %s885 = sshll.u32 %s876, 4
          %s886 = int_to_ptr.vmem [resolvable:$true] %s885
          %891 = dma.vmem_to_hbm [thread:$0]  %s886, 2048, %s884, %s873, 128, 256, 8
        $region64: #{tpu_custom_call.1} parent=39 // pred_fallthru
          _
      $region40: #{tpu_custom_call.1} parent=5 // pred_fallthru
        _
      %p892 = scmp.le.s32.totalorder 2, %s20
      // Predicated region
      $region65: #{tpu_custom_call.1} parent=5 // pred_check
        %p893 = pneg %p892
      $region66: #{tpu_custom_call.1} parent=5 // pred_check_branch
        %895 = sbr.rel (%p893) target = $region68
      $region67: #{tpu_custom_call.1} parent=5 // pred_region
        %s896 = ssub.s32 %s20, 2
        // Predicated region
        $region69: #{tpu_custom_call.1} parent=67 // pred_check
          %p897 = pneg %p193
        $region70: #{tpu_custom_call.1} parent=67 // pred_check_branch
          %899 = sbr.rel (%p897) target = $region72
        $region71: #{tpu_custom_call.1} parent=67 // pred_region
          %s900 = sand.u32 %s178, 1
          %s901 = scalar_lea.sflag [#allocation4], %s900
          %s902 = sand.u32 %s178, 1
          %s903 = smul.addr %s902, 128
          %s904 = scalar_lea.vmem [#allocation7], %s903
          %905 = dma.done %s901, 2048
        $region72: #{tpu_custom_call.1} parent=67 // pred_fallthru
          _
      $region68: #{tpu_custom_call.1} parent=5 // pred_fallthru
        _
    $region6: #{tpu_custom_call.1} parent=1 // loop_footer
      %s24 = sadd.s32 1, %s20
    $region7: #{tpu_custom_call.1} parent=1 // loop_footer_branch
      %19 = sbr.rel target = $region3
    $region8: #{tpu_custom_call.1} parent=1 // loop_exit
      _
    %906 = vsyncpa [#allocation3], 1
    %s907 = scalar_lea.sflag [#allocation3], 1
    %908 = vsyncpa %s907, 1
    %909 = vsyncpa [#allocation6], 1
    %s910 = scalar_lea.sflag [#allocation6], 1
    %911 = vsyncpa %s910, 1
    %912 = vsyncpa [#allocation4], 1
    %s913 = scalar_lea.sflag [#allocation4], 1
    %914 = vsyncpa %s913, 1

</llo_original>
